<compile_context>
chip_gen: v6e
topology: v6e:2x2x1
jax: 0.10.0
libtpu: 0.0.40
codegen_flags: <defaults>
</compile_context>

<pallas_src>
from math import pi

import jax
import jax.numpy as jnp
from jax.experimental import pallas as pl
from jax.experimental.pallas import tpu as pltpu


def _fixed_varier_kernel(params_smem, o_ref):
    """params_smem: f32[4] in SMEM.  o_ref: (rows, cols) VMEM tile.

    cols is either 4 (tiny-B path) or 128 (lane-dense path, where every group
    of 4 consecutive lanes is one [raw_omega, delta, raw_phi, raw_time]
    quadruple of the row-major (B, 4) output).
    """
    rows, cols = o_ref.shape
    w0 = params_smem[0]
    w1 = params_smem[1]
    w2 = params_smem[2]
    w3 = params_smem[3]
    # Build the 4-periodic pattern once on a single row, then broadcast down
    # the sublanes (cheaper than materialising a full-tile iota + 3 selects).
    col = jax.lax.broadcasted_iota(jnp.int32, (1, cols), dimension=1) % 4
    row = jnp.where(
        col == 0, w0,
        jnp.where(col == 1, w1, jnp.where(col == 2, w2, w3)))
    o_ref[...] = jnp.broadcast_to(row, (rows, cols)).astype(o_ref.dtype)


def fixed_varier_forward(x: jax.Array, fixed_params: jax.Array) -> jax.Array:
    """Equivalent of FixedVarier.forward: fixed_params expanded to (b, 4)."""
    b = x.shape[0]
    params = fixed_params.reshape(4).astype(jnp.float32)

    smem_spec = pl.BlockSpec(memory_space=pltpu.MemorySpace.SMEM)

    if (b * 4) % 128 == 0:
        # Lane-dense path: view the contiguous row-major (B, 4) output as a
        # (B*4/128, 128) f32 slab -> unmasked full-width stores.
        slab_rows = (b * 4) // 128
        # Tile rows: either the full (possibly non-multiple-of-8) extent, or a
        # sublane-aligned 512-row tile (512*128*4B = 256 KiB per buffer).
        tile_rows = slab_rows if slab_rows <= 512 else 512
        grid = (pl.cdiv(slab_rows, tile_rows),)
        out = pl.pallas_call(
            _fixed_varier_kernel,
            out_shape=jax.ShapeDtypeStruct((slab_rows, 128), jnp.float32),
            grid=grid,
            in_specs=[smem_spec],
            out_specs=pl.BlockSpec((tile_rows, 128), lambda i: (i, 0)),
            compiler_params=pltpu.CompilerParams(
                dimension_semantics=("parallel",)),
        )(params)
        return out.reshape(b, 4)

    # Tiny / unaligned-B path: single full-array block (legal because the
    # block equals the full array shape).
    out = pl.pallas_call(
        _fixed_varier_kernel,
        out_shape=jax.ShapeDtypeStruct((b, 4), jnp.float32),
        grid=(1,),
        in_specs=[smem_spec],
        out_specs=pl.BlockSpec((b, 4), lambda i: (0, 0)),
    )(params)
    return out


if __name__ == "__main__":
    key = jax.random.PRNGKey(0)

    # Deterministic "fixed" variational params: [raw_omega, delta, raw_phi, raw_time]
    fixed_params = jnp.array([pi, 0.5, 0.25 * pi, 1.0], dtype=jnp.float32)

    # Small dummy input; only the batch dim is consumed (reference ignores values).
    batch = 2
    x = jax.random.normal(key, (batch, 4, 16, 16), dtype=jnp.float32)

    out = fixed_varier_forward(x, fixed_params)
    out = jax.block_until_ready(out)

    ref = jnp.broadcast_to(fixed_params[None, :], (batch, 4))
    assert out.shape == (batch, 4), out.shape
    assert out.dtype == jnp.float32
    assert jnp.allclose(out, ref), (out, ref)

    # Also exercise the lane-dense (B*4 % 128 == 0) path once.
    batch_big = 64
    x_big = jax.random.normal(key, (batch_big, 4, 16, 16), dtype=jnp.float32)
    out_big = jax.block_until_ready(fixed_varier_forward(x_big, fixed_params))
    ref_big = jnp.broadcast_to(fixed_params[None, :], (batch_big, 4))
    assert out_big.shape == (batch_big, 4)
    assert jnp.allclose(out_big, ref_big)

    print("KERNEL_OK")
</pallas_src>

<mosaic_0001>
module attributes {stable_mosaic.version = 11 : i64} {
  func.func @_fixed_varier_kernel(%arg0: i32, %arg1: memref<4xf32, #tpu.memory_space<smem>>, %arg2: memref<2x4xf32, #tpu.memory_space<vmem>>) attributes {dimension_semantics = [#tpu.dimension_semantics<arbitrary>], iteration_bounds = array<i64: 1>, scalar_prefetch = 0 : i64, scratch_operands = 0 : i64, tpu.core_type = #tpu.core_type<tc>, window_params = [{transform_indices = @transform_0, window_bounds = array<i64: 4>}, {pipeline_mode = #tpu.pipeline_mode<synchronous>, transform_indices = @transform_1, window_bounds = array<i64: 2, 4>}]} {
    %c0 = arith.constant 0 : index
    %0 = memref.load %arg1[%c0] : memref<4xf32, #tpu.memory_space<smem>>
    %c1 = arith.constant 1 : index
    %1 = memref.load %arg1[%c1] : memref<4xf32, #tpu.memory_space<smem>>
    %c2 = arith.constant 2 : index
    %2 = memref.load %arg1[%c2] : memref<4xf32, #tpu.memory_space<smem>>
    %c3 = arith.constant 3 : index
    %3 = memref.load %arg1[%c3] : memref<4xf32, #tpu.memory_space<smem>>
    %4 = tpu.iota {dimensions = array<i32: 1>} : vector<1x4xi32>
    %c4_i32 = arith.constant 4 : i32
    %c0_i32 = arith.constant 0 : i32
    %5 = arith.cmpi eq, %c4_i32, %c0_i32 : i32
    %c1_i32 = arith.constant 1 : i32
    %6 = arith.select %5, %c1_i32, %c4_i32 : i32
    %7 = vector.broadcast %6 : i32 to vector<1x4xi32>
    %8 = arith.remsi %4, %7 : vector<1x4xi32>
    %c0_i32_0 = arith.constant 0 : i32
    %9 = vector.broadcast %c0_i32_0 : i32 to vector<1x4xi32>
    %10 = arith.cmpi ne, %8, %9 : vector<1x4xi32>
    %c0_i32_1 = arith.constant 0 : i32
    %11 = vector.broadcast %c0_i32_1 : i32 to vector<1x4xi32>
    %12 = arith.cmpi slt, %8, %11 : vector<1x4xi32>
    %c0_i32_2 = arith.constant 0 : i32
    %13 = arith.cmpi slt, %6, %c0_i32_2 : i32
    %14 = vector.broadcast %13 : i1 to vector<1x4xi1>
    %15 = vector.broadcast %14 : vector<1x4xi1> to vector<1x4xi1>
    %16 = arith.xori %12, %15 : vector<1x4xi1>
    %17 = arith.andi %16, %10 : vector<1x4xi1>
    %18 = vector.broadcast %6 : i32 to vector<1x4xi32>
    %19 = arith.addi %8, %18 : vector<1x4xi32>
    %20 = arith.select %17, %19, %8 : vector<1x4xi1>, vector<1x4xi32>
    %c0_i32_3 = arith.constant 0 : i32
    %21 = vector.broadcast %c0_i32_3 : i32 to vector<1x4xi32>
    %22 = arith.cmpi eq, %20, %21 : vector<1x4xi32>
    %c1_i32_4 = arith.constant 1 : i32
    %23 = vector.broadcast %c1_i32_4 : i32 to vector<1x4xi32>
    %24 = arith.cmpi eq, %20, %23 : vector<1x4xi32>
    %c2_i32 = arith.constant 2 : i32
    %25 = vector.broadcast %c2_i32 : i32 to vector<1x4xi32>
    %26 = arith.cmpi eq, %20, %25 : vector<1x4xi32>
    %27 = vector.broadcast %2 : f32 to vector<1x4xf32>
    %28 = vector.broadcast %3 : f32 to vector<1x4xf32>
    %29 = arith.select %26, %27, %28 : vector<1x4xi1>, vector<1x4xf32>
    %30 = vector.broadcast %1 : f32 to vector<1x4xf32>
    %31 = arith.select %24, %30, %29 : vector<1x4xi1>, vector<1x4xf32>
    %32 = vector.broadcast %0 : f32 to vector<1x4xf32>
    %33 = arith.select %22, %32, %31 : vector<1x4xi1>, vector<1x4xf32>
    %34 = vector.shape_cast %33 : vector<1x4xf32> to vector<1x4xf32>
    %35 = vector.broadcast %34 : vector<1x4xf32> to vector<2x4xf32>
    %c0_5 = arith.constant 0 : index
    %c0_6 = arith.constant 0 : index
    %36 = vector.load %arg2[%c0_5, %c0_6] : memref<2x4xf32, #tpu.memory_space<vmem>>, vector<2x4xf32>
    tpu.vector_store %arg2[%c0_5, %c0_6], %35 {strides = array<i32>} : memref<2x4xf32, #tpu.memory_space<vmem>>, vector<2x4xf32>,
    return
  }
  func.func @transform_0(%arg0: i32) -> i32 {
    %c0_i32 = arith.constant 0 : i32
    %c0_i32_0 = arith.constant 0 : i32
    return %c0_i32 : i32
  }
  func.func @transform_1(%arg0: i32) -> (i32, i32) {
    %c0_i32 = arith.constant 0 : i32
    %c0_i32_0 = arith.constant 0 : i32
    %c0_i32_1 = arith.constant 0 : i32
    return %c0_i32, %c0_i32_0 : i32, i32
  }
}

</mosaic_0001>

<llo_original>
// kernel: tpu_custom_call.1
$region0: #{tpu_custom_call.1}
  #allocation0 [shape = 'u32[]', space=smem, size = 0x4, offset = 0x4, fixed_abs, tag = 'smem constant byte address 0x4 - core index']
  #allocation1 [shape = 'u32[144,128]{1,0:T(1,128)}', space=vmem, size = 0x12000, scoped, tag = 'internal scratch']
  %s0 = inlined_call_operand.hbm [shape: f32[4], index: 0, kind: input, shape index: {}]
  %s1 = inlined_call_operand.hbm [shape: f32[2,4], index: 1, kind: output, shape index: {}]
  %s2 = sld [smem:[#allocation0]]
  $region18: #{tpu_custom_call.1} parent=0
    _
  %s4 = ssub.s32 1, %s2
  %s5 = scalar_select 0, %s4, %s2
  $region1: #{tpu_custom_call.1} parent=0
    #allocation2 [shape = 'u8[512]{0}', space=smem, size = 0x200, scoped, tag = 'input window, operand 0, single buffered']
    #allocation3 [shape = 's32[1]{0}', space=sflag, size = 0x4, scoped, tag = 'scoped memory for tpu_custom_call.1']
    #allocation4 [shape = 's32[1]{0}', space=sflag, size = 0x4, scoped, tag = 'scoped memory for tpu_custom_call.1']
    #allocation5 [shape = 'u8[1024]{0}', space=vmem, size = 0x400, scoped, tag = 'output window, operand 0, single buffered']
    %6 = vsyncpa [#allocation4], 0
    %7 = vsyncpa [#allocation3], 0
    // Predicated region
    $region2: #{tpu_custom_call.1} parent=1 // pred_check
      _
    $region3: #{tpu_custom_call.1} parent=1 // pred_check_branch
      %9 = sbr.rel (0) target = $region5
    $region4: #{tpu_custom_call.1} parent=1 // pred_region
      %s11 = ssub.s32 16, 16
      %12 = vsyncadd [#allocation4], %s11
      %15 = dma.hbm_to_smem %s0, 16, [#allocation2], [#allocation4]
    $region5: #{tpu_custom_call.1} parent=1 // pred_fallthru
      _
    // Predicated region
    $region6: #{tpu_custom_call.1} parent=1 // pred_check
      _
    $region7: #{tpu_custom_call.1} parent=1 // pred_check_branch
      %17 = sbr.rel (0) target = $region9
    $region8: #{tpu_custom_call.1} parent=1 // pred_region
      %18 = dma.done [#allocation4], 16
    $region9: #{tpu_custom_call.1} parent=1 // pred_fallthru
      _
    %19 = sfence
    %s20 = sld [smem:[#allocation2]]
    %s21 = sld [smem:[#allocation2 + $0x1]]
    %s22 = sld [smem:[#allocation2 + $0x2]]
    %s23 = sld [smem:[#allocation2 + $0x3]]
    %v24 = vlaneseq
    %v25 = vand.u32 %v24, 127
    %vm26 = vcmp.lt.s32.totalorder %v25, 0
    %v27 = vsub.s32 0, %v25
    %v28 = vsel %vm26, %v27, %v25
    %v29 = vshrl.u32 %v28, 2
    %v30 = vand.u32 %v28, 3
    %v31 = vsub.s32 0, %v30
    %v32 = vsel %vm26, %v31, %v30
    %vm33 = vcmp.ne.s32.totalorder %v32, 0
    %vm34 = vcmp.lt.s32.totalorder %v32, 0
    %vm35 = vmand %vm34, %vm33
    %v36 = vadd.s32 %v32, 4
    %v37 = vsel %vm35, %v36, %v32
    %vm38 = vcmp.eq.s32.totalorder %v37, 0
    %vm39 = vcmp.eq.s32.totalorder %v37, 1
    %vm40 = vcmp.eq.s32.totalorder %v37, 2
    %v41 = vstv %s22
    %v42 = vstv %s23
    %v43 = vsel %vm40, %v41, %v42
    %v44 = vstv %s21
    %v45 = vsel %vm39, %v44, %v43
    %v46 = vstv %s20
    %v47 = vsel %vm38, %v46, %v45
    %vm48 = vcmask 25600
    %49 = vst.msk [vmem:[#allocation5] sm:$0x3] %vm48, %v47
    // Predicated region
    $region10: #{tpu_custom_call.1} parent=1 // pred_check
      _
    $region11: #{tpu_custom_call.1} parent=1 // pred_check_branch
      %51 = sbr.rel (0) target = $region13
    $region12: #{tpu_custom_call.1} parent=1 // pred_region
      %s53 = ssub.s32 32, 32
      %54 = vsyncadd [#allocation3], %s53
      %s56 = sshll.u32 [#allocation5], 4
      %s57 = int_to_ptr.vmem [resolvable:$true] %s56
      %59 = dma.vmem_to_hbm [thread:$0]  %s57, 32, %s1, [#allocation3]
    $region13: #{tpu_custom_call.1} parent=1 // pred_fallthru
      _
    // Predicated region
    $region14: #{tpu_custom_call.1} parent=1 // pred_check
      _
    $region15: #{tpu_custom_call.1} parent=1 // pred_check_branch
      %61 = sbr.rel (0) target = $region17
    $region16: #{tpu_custom_call.1} parent=1 // pred_region
      %62 = dma.done [#allocation3], 32
    $region17: #{tpu_custom_call.1} parent=1 // pred_fallthru
      _
    %63 = vsyncpa [#allocation3], 1
    %64 = vsyncpa [#allocation4], 1

</llo_original>
